<compile_context>
chip_gen: v7x
topology: tpu7x:2x2x1
jax: 0.10.0
libtpu: 0.0.40
codegen_flags: <defaults>
</compile_context>

<pallas_src>
import functools

import jax
import jax.numpy as jnp
from jax.experimental import pallas as pl
from jax.experimental.pallas import tpu as pltpu


def _round_up(n, m):
    return ((n + m - 1) // m) * m


def qnet_kernel(x_ref, w1_ref, b1_ref, w2_ref, b2_ref, out_ref):
    # Cast the f32 activations to the MXU compute dtype inside the kernel
    # (on the VPU, hidden under the DMA) rather than a wrapper-side astype pass.
    x = x_ref[...].astype(w1_ref.dtype)
    # fc1: x @ W1 + b1, ReLU.  MXU matmul with f32 accumulation; f32 epilogue.
    h = jnp.dot(x, w1_ref[...], preferred_element_type=jnp.float32)
    h = jnp.maximum(h + b1_ref[...], 0.0)  # b1 is (1, hidden): broadcasts over rows
    # fc2: h @ W2 + b2.
    q = jnp.dot(h.astype(w2_ref.dtype), w2_ref[...], preferred_element_type=jnp.float32)
    out_ref[...] = (q + b2_ref[...]).astype(out_ref.dtype)


@functools.partial(jax.jit, static_argnames=("tm",))
def qnet_forward(x, w1, b1, w2, b2, *, tm=2048):
    """relu(x @ w1 + b1) @ w2 + b2.  Weights stored [in, out]; x stays f32."""
    B, state_dim = x.shape
    hidden_dim = w1.shape[1]
    action_dim = w2.shape[1]

    # Batch tile: as large as possible (per-grid-step overhead ~0.35 us), but with
    # at least two grid steps whenever the batch allows it so the "parallel" batch
    # axis can be sharded across v7x's 2 TensorCores.  Multiple-of-8 for the
    # sublane constraint; the cdiv grid handles ragged last blocks.
    half = -(-B // 2)
    tm_eff = max(8, min(tm, _round_up(half, 8)))
    grid = (pl.cdiv(B, tm_eff),)

    out = pl.pallas_call(
        qnet_kernel,
        out_shape=jax.ShapeDtypeStruct((B, action_dim), jnp.float32),
        grid_spec=pltpu.PrefetchScalarGridSpec(
            num_scalar_prefetch=0,
            grid=grid,
            in_specs=[
                # x tile: (tm_eff, state_dim), marches down the batch axis
                pl.BlockSpec((tm_eff, state_dim), lambda i: (i, 0)),
                # weights / biases: full (tiny) arrays, same block every grid step
                # (at large hidden_dim, add pipeline_mode=pl.Buffered(1) here)
                pl.BlockSpec((state_dim, hidden_dim), lambda i: (0, 0)),
                pl.BlockSpec((1, hidden_dim), lambda i: (0, 0)),
                pl.BlockSpec((hidden_dim, action_dim), lambda i: (0, 0)),
                pl.BlockSpec((1, action_dim), lambda i: (0, 0)),
            ],
            # Unpadded, narrow (action_dim) output block: last dim equals the full
            # array dim, so this is legal; the masked store is irrelevant here.
            out_specs=pl.BlockSpec((tm_eff, action_dim), lambda i: (i, 0)),
        ),
        compiler_params=pltpu.CompilerParams(
            # batch axis is embarrassingly parallel -> shards across v7x's 2 TCs
            dimension_semantics=("parallel",),
        ),
    )(x, w1, b1, w2, b2)
    return out


def prepare_qnet_params(w1, b1, w2, b2, compute_dtype=jnp.bfloat16):
    """One-time cast of weights to the MXU compute dtype (biases stay f32, added
    post-accumulate).  Done OUTSIDE the per-step forward so no per-call astype
    ops are launched inside the RL inner loop."""
    return (w1.astype(compute_dtype), b1.astype(jnp.float32),
            w2.astype(compute_dtype), b2.astype(jnp.float32))


def init_qnet_params(key, state_dim, hidden_dim, action_dim):
    """Deterministic init mimicking torch.nn.Linear default (uniform +/- 1/sqrt(fan_in))."""
    k1, k2, k3, k4 = jax.random.split(key, 4)
    bound1 = 1.0 / jnp.sqrt(state_dim)
    bound2 = 1.0 / jnp.sqrt(hidden_dim)
    # Stored already transposed: [in, out]
    w1 = jax.random.uniform(k1, (state_dim, hidden_dim), jnp.float32, -bound1, bound1)
    b1 = jax.random.uniform(k2, (1, hidden_dim), jnp.float32, -bound1, bound1)
    w2 = jax.random.uniform(k3, (hidden_dim, action_dim), jnp.float32, -bound2, bound2)
    b2 = jax.random.uniform(k4, (1, action_dim), jnp.float32, -bound2, bound2)
    return w1, b1, w2, b2


def qnet_reference(x, w1, b1, w2, b2, compute_dtype=jnp.float32):
    """Pure-JAX reference following the same dtype path as the kernel."""
    h = jnp.dot(x.astype(compute_dtype), w1.astype(compute_dtype),
                preferred_element_type=jnp.float32) + b1
    h = jnp.maximum(h, 0.0)
    return jnp.dot(h.astype(compute_dtype), w2.astype(compute_dtype),
                   preferred_element_type=jnp.float32) + b2


if __name__ == "__main__":
    # Shapes consistent with the module: state_dim=16, hidden_dim=32, action_dim=8
    state_dim, hidden_dim, action_dim = 16, 32, 8

    key = jax.random.PRNGKey(0)
    kx, kp, kx2 = jax.random.split(key, 3)
    w1, b1, w2, b2 = init_qnet_params(kp, state_dim, hidden_dim, action_dim)

    # --- bf16 MXU weights prepared once, ragged batch: exercises the cdiv grid,
    #     the masked last block, and the 2-step parallel grid ---
    pw1, pb1, pw2, pb2 = prepare_qnet_params(w1, b1, w2, b2, jnp.bfloat16)
    batch = 300
    x = jax.random.normal(kx, (batch, state_dim), jnp.float32)
    out_bf16 = jax.block_until_ready(qnet_forward(x, pw1, pb1, pw2, pb2))
    assert out_bf16.shape == (batch, action_dim)
    ref_bf16 = qnet_reference(x, w1, b1, w2, b2, jnp.bfloat16)
    assert jnp.allclose(out_bf16, ref_bf16, atol=1e-4, rtol=1e-2), "bf16 mismatch vs bf16 reference"
    ref_f32 = qnet_reference(x, w1, b1, w2, b2, jnp.float32)
    assert jnp.allclose(out_bf16, ref_f32, atol=5e-2, rtol=5e-2), "bf16 too far from f32 math"

    # --- small batch, f32-weight path (MXU default precision; tolerance documents
    #     the possible multi-pass bf16 lowering of an f32 dot) ---
    fw1, fb1, fw2, fb2 = prepare_qnet_params(w1, b1, w2, b2, jnp.float32)
    batch2 = 16
    x2 = jax.random.normal(kx2, (batch2, state_dim), jnp.float32)
    out_f32 = jax.block_until_ready(qnet_forward(x2, fw1, fb1, fw2, fb2))
    assert out_f32.shape == (batch2, action_dim)
    ref2_f32 = qnet_reference(x2, w1, b1, w2, b2, jnp.float32)
    assert jnp.allclose(out_f32, ref2_f32, atol=1e-4, rtol=1e-4), "f32 mismatch vs reference"

    print("KERNEL_OK")
</pallas_src>

<mosaic_0001>
module attributes {stable_mosaic.version = 11 : i64} {
  func.func @qnet_kernel(%arg0: i32, %arg1: memref<152x16xf32, #tpu.memory_space<vmem>>, %arg2: memref<16x32xbf16, #tpu.memory_space<vmem>>, %arg3: memref<1x32xf32, #tpu.memory_space<vmem>>, %arg4: memref<32x8xbf16, #tpu.memory_space<vmem>>, %arg5: memref<1x8xf32, #tpu.memory_space<vmem>>, %arg6: memref<152x8xf32, #tpu.memory_space<vmem>>) attributes {dimension_semantics = [#tpu.dimension_semantics<parallel>], iteration_bounds = array<i64: 2>, scalar_prefetch = 0 : i64, scratch_operands = 0 : i64, tpu.core_type = #tpu.core_type<tc>, window_params = [{transform_indices = @transform_0, window_bounds = array<i64: 152, 16>}, {pipeline_mode = #tpu.pipeline_mode<synchronous>, transform_indices = @transform_1, window_bounds = array<i64: 16, 32>}, {pipeline_mode = #tpu.pipeline_mode<synchronous>, transform_indices = @transform_2, window_bounds = array<i64: 1, 32>}, {pipeline_mode = #tpu.pipeline_mode<synchronous>, transform_indices = @transform_3, window_bounds = array<i64: 32, 8>}, {pipeline_mode = #tpu.pipeline_mode<synchronous>, transform_indices = @transform_4, window_bounds = array<i64: 1, 8>}, {transform_indices = @transform_5, window_bounds = array<i64: 152, 8>}]} {
    %c0 = arith.constant 0 : index
    %c0_0 = arith.constant 0 : index
    %0 = vector.load %arg1[%c0, %c0_0] : memref<152x16xf32, #tpu.memory_space<vmem>>, vector<152x16xf32>
    %1 = arith.truncf %0 : vector<152x16xf32> to vector<152x16xbf16>
    %c0_1 = arith.constant 0 : index
    %c0_2 = arith.constant 0 : index
    %2 = vector.load %arg2[%c0_1, %c0_2] : memref<16x32xbf16, #tpu.memory_space<vmem>>, vector<16x32xbf16>
    %cst = arith.constant dense<0.000000e+00> : vector<152x32xf32>
    %3 = tpu.matmul %1, %2, %cst {dimension_numbers = #tpu.dot_dimension_numbers<[1], [0], [0], [1], [0, 0, 1, 1], [], []>} : vector<152x16xbf16>, vector<16x32xbf16>, vector<152x32xf32> -> vector<152x32xf32>
    %c0_3 = arith.constant 0 : index
    %c0_4 = arith.constant 0 : index
    %4 = vector.load %arg3[%c0_3, %c0_4] : memref<1x32xf32, #tpu.memory_space<vmem>>, vector<1x32xf32>
    %5 = vector.broadcast %4 : vector<1x32xf32> to vector<152x32xf32>
    %6 = arith.addf %3, %5 : vector<152x32xf32>
    %cst_5 = arith.constant 0.000000e+00 : f32
    %7 = vector.broadcast %cst_5 : f32 to vector<152x32xf32>
    %8 = arith.maximumf %6, %7 : vector<152x32xf32>
    %9 = arith.truncf %8 : vector<152x32xf32> to vector<152x32xbf16>
    %c0_6 = arith.constant 0 : index
    %c0_7 = arith.constant 0 : index
    %10 = vector.load %arg4[%c0_6, %c0_7] : memref<32x8xbf16, #tpu.memory_space<vmem>>, vector<32x8xbf16>
    %cst_8 = arith.constant dense<0.000000e+00> : vector<152x8xf32>
    %11 = tpu.matmul %9, %10, %cst_8 {dimension_numbers = #tpu.dot_dimension_numbers<[1], [0], [0], [1], [0, 0, 1, 1], [], []>} : vector<152x32xbf16>, vector<32x8xbf16>, vector<152x8xf32> -> vector<152x8xf32>
    %c0_9 = arith.constant 0 : index
    %c0_10 = arith.constant 0 : index
    %12 = vector.load %arg5[%c0_9, %c0_10] : memref<1x8xf32, #tpu.memory_space<vmem>>, vector<1x8xf32>
    %13 = vector.broadcast %12 : vector<1x8xf32> to vector<152x8xf32>
    %14 = arith.addf %11, %13 : vector<152x8xf32>
    %c0_11 = arith.constant 0 : index
    %c0_12 = arith.constant 0 : index
    %15 = vector.load %arg6[%c0_11, %c0_12] : memref<152x8xf32, #tpu.memory_space<vmem>>, vector<152x8xf32>
    tpu.vector_store %arg6[%c0_11, %c0_12], %14 {strides = array<i32>} : memref<152x8xf32, #tpu.memory_space<vmem>>, vector<152x8xf32>,
    return
  }
  func.func @transform_0(%arg0: i32) -> (i32, i32) {
    %c0_i32 = arith.constant 0 : i32
    %c0_i32_0 = arith.constant 0 : i32
    return %arg0, %c0_i32 : i32, i32
  }
  func.func @transform_1(%arg0: i32) -> (i32, i32) {
    %c0_i32 = arith.constant 0 : i32
    %c0_i32_0 = arith.constant 0 : i32
    %c0_i32_1 = arith.constant 0 : i32
    return %c0_i32, %c0_i32_0 : i32, i32
  }
  func.func @transform_2(%arg0: i32) -> (i32, i32) {
    %c0_i32 = arith.constant 0 : i32
    %c0_i32_0 = arith.constant 0 : i32
    %c0_i32_1 = arith.constant 0 : i32
    return %c0_i32, %c0_i32_0 : i32, i32
  }
  func.func @transform_3(%arg0: i32) -> (i32, i32) {
    %c0_i32 = arith.constant 0 : i32
    %c0_i32_0 = arith.constant 0 : i32
    %c0_i32_1 = arith.constant 0 : i32
    return %c0_i32, %c0_i32_0 : i32, i32
  }
  func.func @transform_4(%arg0: i32) -> (i32, i32) {
    %c0_i32 = arith.constant 0 : i32
    %c0_i32_0 = arith.constant 0 : i32
    %c0_i32_1 = arith.constant 0 : i32
    return %c0_i32, %c0_i32_0 : i32, i32
  }
  func.func @transform_5(%arg0: i32) -> (i32, i32) {
    %c0_i32 = arith.constant 0 : i32
    %c0_i32_0 = arith.constant 0 : i32
    return %arg0, %c0_i32 : i32, i32
  }
}

</mosaic_0001>

<llo_original>
// kernel: qnet_forward.1
$region0: #{qnet_forward.1}
  #allocation0 [shape = 'u32[]', space=smem, size = 0x4, offset = 0x4, fixed_abs, tag = 'smem constant byte address 0x4 - core index']
  #allocation1 [shape = 'u32[144,128]{1,0:T(1,128)}', space=vmem, size = 0x12000, scoped, tag = 'internal scratch']
  %s0 = inlined_call_operand.vmem [shape: f32[300,16], index: 0, kind: input, shape index: {}]
  %s1 = inlined_call_operand.vmem [shape: bf16[16,32], index: 1, kind: input, shape index: {}]
  %s2 = inlined_call_operand.vmem [shape: f32[1,32], index: 2, kind: input, shape index: {}]
  %s3 = inlined_call_operand.vmem [shape: bf16[32,8], index: 3, kind: input, shape index: {}]
  %s4 = inlined_call_operand.vmem [shape: f32[1,8], index: 4, kind: input, shape index: {}]
  %s5 = inlined_call_operand.vmem [shape: f32[300,8], index: 5, kind: output, shape index: {}]
  %s6 = sld [smem:[#allocation0]]
  $region53: #{qnet_forward.1} parent=0
    _
  %s8 = ssub.s32 1, %s6
  %s9 = scalar_select 0, %s8, %s6
  loop: start=0, step=1, limit=4
  $region2: #{qnet_forward.1} parent=0 // loop_pre_header
    _
  $region3: #{qnet_forward.1} parent=0 // loop_header
    %s11 = sphi 0, %s15
    %p12 = scmp.ge.s32.totalorder %s11, 4
    %s21 = sphi 0, %s23
    %s24 = sphi 0, %s21
    %s25 = sphi 0, %s24
    %s41 = sphi 0, %s25
    %s45 = sphi 0, %s45
    %s47 = sphi 0, %s45
    %s48 = sphi 0, %s47
    %s62 = sphi 0, %s48
    %s66 = sphi 0, %s66
    %s68 = sphi 0, %s66
    %s69 = sphi 0, %s68
    %s83 = sphi 0, %s69
    %s87 = sphi 0, %s87
    %s89 = sphi 0, %s87
    %s90 = sphi 0, %s89
    %s104 = sphi 0, %s90
    %s108 = sphi 0, %s108
    %s110 = sphi 0, %s108
    %s111 = sphi 0, %s110
    %s125 = sphi 0, %s111
    %s131 = sphi 0, %s133
    %s134 = sphi 0, %s131
    %s135 = sphi 0, %s134
    %s151 = sphi 0, %s135
  $region4: #{qnet_forward.1} parent=0 // loop_header_branch
    %14 = sbr.rel (%p12) target = $region8
  $region5: #{qnet_forward.1} parent=0 // loop_body
    %s16 = ssub.s32 %s11, 1
    %s17 = ssub.s32 %s11, 2
    %s18 = sadd.s32 %s11, 1
    %s19 = ssub.s32 %s11, %s18
    %p20 = scmp.eq.s32.totalorder %s19, 0
    %s22 = sadd.s32 %s21, 1
    %s23 = scalar_select %p20, %s21, %s22
    %p26 = pneg %p20
    %p27 = scmp.eq.s32.totalorder %s11, 1
    %p28 = por %p26, %p27
    %p29 = scmp.ne.s32.totalorder %s21, %s24
    %p30 = scmp.eq.s32.totalorder %s11, 0
    %p31 = por %p29, %p30
    %p32 = scmp.ne.s32.totalorder %s21, %s24
    %p33 = scmp.eq.s32.totalorder %s16, 1
    %p34 = por %p32, %p33
    %p35 = scmp.ne.s32.totalorder %s24, %s25
    %p36 = scmp.eq.s32.totalorder %s16, 0
    %p37 = por %p35, %p36
    %p38 = scmp.ne.s32.totalorder %s24, %s25
    %p39 = scmp.eq.s32.totalorder %s17, 1
    %p40 = por %p38, %p39
    %p42 = scmp.ne.s32.totalorder %s25, %s41
    %p43 = scmp.eq.s32.totalorder %s17, 0
    %p44 = por %p42, %p43
    %s46 = sadd.s32 %s45, 1
    %p49 = scmp.eq.s32.totalorder %s11, 1
    %p50 = scmp.ne.s32.totalorder %s45, %s47
    %p51 = scmp.eq.s32.totalorder %s11, 0
    %p52 = por %p50, %p51
    %p53 = scmp.ne.s32.totalorder %s45, %s47
    %p54 = scmp.eq.s32.totalorder %s16, 1
    %p55 = por %p53, %p54
    %p56 = scmp.ne.s32.totalorder %s47, %s48
    %p57 = scmp.eq.s32.totalorder %s16, 0
    %p58 = por %p56, %p57
    %p59 = scmp.ne.s32.totalorder %s47, %s48
    %p60 = scmp.eq.s32.totalorder %s17, 1
    %p61 = por %p59, %p60
    %p63 = scmp.ne.s32.totalorder %s48, %s62
    %p64 = scmp.eq.s32.totalorder %s17, 0
    %p65 = por %p63, %p64
    %s67 = sadd.s32 %s66, 1
    %p70 = scmp.eq.s32.totalorder %s11, 1
    %p71 = scmp.ne.s32.totalorder %s66, %s68
    %p72 = scmp.eq.s32.totalorder %s11, 0
    %p73 = por %p71, %p72
    %p74 = scmp.ne.s32.totalorder %s66, %s68
    %p75 = scmp.eq.s32.totalorder %s16, 1
    %p76 = por %p74, %p75
    %p77 = scmp.ne.s32.totalorder %s68, %s69
    %p78 = scmp.eq.s32.totalorder %s16, 0
    %p79 = por %p77, %p78
    %p80 = scmp.ne.s32.totalorder %s68, %s69
    %p81 = scmp.eq.s32.totalorder %s17, 1
    %p82 = por %p80, %p81
    %p84 = scmp.ne.s32.totalorder %s69, %s83
    %p85 = scmp.eq.s32.totalorder %s17, 0
    %p86 = por %p84, %p85
    %s88 = sadd.s32 %s87, 1
    %p91 = scmp.eq.s32.totalorder %s11, 1
    %p92 = scmp.ne.s32.totalorder %s87, %s89
    %p93 = scmp.eq.s32.totalorder %s11, 0
    %p94 = por %p92, %p93
    %p95 = scmp.ne.s32.totalorder %s87, %s89
    %p96 = scmp.eq.s32.totalorder %s16, 1
    %p97 = por %p95, %p96
    %p98 = scmp.ne.s32.totalorder %s89, %s90
    %p99 = scmp.eq.s32.totalorder %s16, 0
    %p100 = por %p98, %p99
    %p101 = scmp.ne.s32.totalorder %s89, %s90
    %p102 = scmp.eq.s32.totalorder %s17, 1
    %p103 = por %p101, %p102
    %p105 = scmp.ne.s32.totalorder %s90, %s104
    %p106 = scmp.eq.s32.totalorder %s17, 0
    %p107 = por %p105, %p106
    %s109 = sadd.s32 %s108, 1
    %p112 = scmp.eq.s32.totalorder %s11, 1
    %p113 = scmp.ne.s32.totalorder %s108, %s110
    %p114 = scmp.eq.s32.totalorder %s11, 0
    %p115 = por %p113, %p114
    %p116 = scmp.ne.s32.totalorder %s108, %s110
    %p117 = scmp.eq.s32.totalorder %s16, 1
    %p118 = por %p116, %p117
    %p119 = scmp.ne.s32.totalorder %s110, %s111
    %p120 = scmp.eq.s32.totalorder %s16, 0
    %p121 = por %p119, %p120
    %p122 = scmp.ne.s32.totalorder %s110, %s111
    %p123 = scmp.eq.s32.totalorder %s17, 1
    %p124 = por %p122, %p123
    %p126 = scmp.ne.s32.totalorder %s111, %s125
    %p127 = scmp.eq.s32.totalorder %s17, 0
    %p128 = por %p126, %p127
    %s129 = ssub.s32 %s11, %s18
    %p130 = scmp.eq.s32.totalorder %s129, 0
    %s132 = sadd.s32 %s131, 1
    %s133 = scalar_select %p130, %s131, %s132
    %p136 = pneg %p130
    %p137 = scmp.eq.s32.totalorder %s11, 1
    %p138 = por %p136, %p137
    %p139 = scmp.ne.s32.totalorder %s131, %s134
    %p140 = scmp.eq.s32.totalorder %s11, 0
    %p141 = por %p139, %p140
    %p142 = scmp.ne.s32.totalorder %s131, %s134
    %p143 = scmp.eq.s32.totalorder %s16, 1
    %p144 = por %p142, %p143
    %p145 = scmp.ne.s32.totalorder %s134, %s135
    %p146 = scmp.eq.s32.totalorder %s16, 0
    %p147 = por %p145, %p146
    %p148 = scmp.ne.s32.totalorder %s134, %s135
    %p149 = scmp.eq.s32.totalorder %s17, 1
    %p150 = por %p148, %p149
    %p152 = scmp.ne.s32.totalorder %s135, %s151
    %p153 = scmp.eq.s32.totalorder %s17, 0
    %p154 = por %p152, %p153
    %p155 = scmp.le.s32.totalorder 1, %s11
    %p156 = scmp.lt.s32.totalorder %s11, 3
    %p157 = pnand %p155, %p156
    %p158 = pneg %p157
    // Predicated region
    $region9: #{qnet_forward.1} parent=5 // pred_check
      _
    $region10: #{qnet_forward.1} parent=5 // pred_check_branch
      %160 = sbr.rel (%p157) target = $region12
    $region11: #{qnet_forward.1} parent=5 // pred_region
      %s161 = ssub.s32 %s11, 1
      // Predicated region
      $region13: #{qnet_forward.1} parent=11 // pred_check
        %p162 = pneg %p58
      $region14: #{qnet_forward.1} parent=11 // pred_check_branch
        %164 = sbr.rel (%p162) target = $region16
      $region15: #{qnet_forward.1} parent=11 // pred_region
        _
      $region16: #{qnet_forward.1} parent=11 // pred_fallthru
        _
      // Predicated region
      $region17: #{qnet_forward.1} parent=11 // pred_check
        %p165 = pneg %p79
      $region18: #{qnet_forward.1} parent=11 // pred_check_branch
        %167 = sbr.rel (%p165) target = $region20
      $region19: #{qnet_forward.1} parent=11 // pred_region
        _
      $region20: #{qnet_forward.1} parent=11 // pred_fallthru
        _
      // Predicated region
      $region21: #{qnet_forward.1} parent=11 // pred_check
        %p168 = pneg %p100
      $region22: #{qnet_forward.1} parent=11 // pred_check_branch
        %170 = sbr.rel (%p168) target = $region24
      $region23: #{qnet_forward.1} parent=11 // pred_region
        _
      $region24: #{qnet_forward.1} parent=11 // pred_fallthru
        _
      // Predicated region
      $region25: #{qnet_forward.1} parent=11 // pred_check
        %p171 = pneg %p121
      $region26: #{qnet_forward.1} parent=11 // pred_check_branch
        %173 = sbr.rel (%p171) target = $region28
      $region27: #{qnet_forward.1} parent=11 // pred_region
        _
      $region28: #{qnet_forward.1} parent=11 // pred_fallthru
        _
    $region12: #{qnet_forward.1} parent=5 // pred_fallthru
      _
    %p174 = scmp.lt.s32.totalorder %s11, 2
    // Predicated region
    $region29: #{qnet_forward.1} parent=5 // pred_check
      %p175 = pneg %p174
    $region30: #{qnet_forward.1} parent=5 // pred_check_branch
      %177 = sbr.rel (%p175) target = $region32
    $region31: #{qnet_forward.1} parent=5 // pred_region
      // Predicated region
      $region33: #{qnet_forward.1} parent=31 // pred_check
        %p178 = pneg %p31
      $region34: #{qnet_forward.1} parent=31 // pred_check_branch
        %180 = sbr.rel (%p178) target = $region36
      $region35: #{qnet_forward.1} parent=31 // pred_region
        %s181 = smul.u32 19, %s11
        %p182 = scmp.lt.s32.totalorder %s181, 37
        %s183 = scalar_select %p182, %s181, 37
        %s184 = smul.addr %s183, 8
        %s185 = scalar_lea.vmem %s0, %s184
        %s186 = smul.u32 19, %s11
      $region36: #{qnet_forward.1} parent=31 // pred_fallthru
        _
    $region32: #{qnet_forward.1} parent=5 // pred_fallthru
      _
    %p187 = scmp.le.s32.totalorder 1, %s11
    %p188 = scmp.lt.s32.totalorder %s11, 3
    %p189 = pnand %p187, %p188
    %p190 = pneg %p189
    // Predicated region
    $region37: #{qnet_forward.1} parent=5 // pred_check
      _
    $region38: #{qnet_forward.1} parent=5 // pred_check_branch
      %192 = sbr.rel (%p189) target = $region40
    $region39: #{qnet_forward.1} parent=5 // pred_region
      %s193 = ssub.s32 %s11, 1
      %s194 = smul.u32 19, %s16
      %p195 = scmp.lt.s32.totalorder %s194, 37
      %s196 = scalar_select %p195, %s194, 37
      %s197 = smul.addr %s196, 8
      %s198 = scalar_lea.vmem %s0, %s197
      %p199 = pneg %p37
      %p200 = pneg %p34
      %p201 = pneg %p58
      %p202 = pneg %p55
      %p203 = pneg %p79
      %p204 = pneg %p76
      %p205 = pneg %p100
      %p206 = pneg %p97
      %p207 = pneg %p121
      %p208 = pneg %p118
      %p209 = pneg %p147
      %p210 = pneg %p144
      %s211 = smul.u32 19, %s16
      %p212 = scmp.lt.s32.totalorder %s211, 37
      %s213 = scalar_select %p212, %s211, 37
      %s214 = smul.addr %s213, 8
      %s215 = scalar_lea.vmem %s5, %s214
      %s216 = smul.u32 19, %s16
      %p217 = scmp.lt.s32.totalorder %s216, 37
      %s218 = scalar_select %p217, %s216, 37
      %s219 = smul.addr %s218, 8
      %s220 = scalar_lea.vmem %s0, %s219
      %s221 = smul.u32 19, %s16
      %s222 = smul.u32 19, %s16
      %p223 = scmp.lt.s32.totalorder %s222, 37
      %s224 = scalar_select %p223, %s222, 37
      %s225 = smul.addr %s224, 8
      %s226 = scalar_lea.vmem %s5, %s225
      %s227 = smul.u32 19, %s16
      %v229 = vld [vmem:[%s220] sm:$0xff]
      %v230 = vld [vmem:[%s220 + $0x8] sm:$0xff]
      %v231 = vld [vmem:[%s220 + $0x10] sm:$0xff]
      %v232 = vld [vmem:[%s220 + $0x18] sm:$0xff]
      %v233 = vld [vmem:[%s220 + $0x20] sm:$0xff]
      %v234 = vld [vmem:[%s220 + $0x28] sm:$0xff]
      %v235 = vld [vmem:[%s220 + $0x30] sm:$0xff]
      %v236 = vld [vmem:[%s220 + $0x38] sm:$0xff]
      %v237 = vld [vmem:[%s220 + $0x40] sm:$0xff]
      %v238 = vld [vmem:[%s220 + $0x48] sm:$0xff]
      %v239 = vld [vmem:[%s220 + $0x50] sm:$0xff]
      %v240 = vld [vmem:[%s220 + $0x58] sm:$0xff]
      %v241 = vld [vmem:[%s220 + $0x60] sm:$0xff]
      %v242 = vld [vmem:[%s220 + $0x68] sm:$0xff]
      %v243 = vld [vmem:[%s220 + $0x70] sm:$0xff]
      %v244 = vld [vmem:[%s220 + $0x78] sm:$0xff]
      %v245 = vld [vmem:[%s220 + $0x80] sm:$0xff]
      %v246 = vld [vmem:[%s220 + $0x88] sm:$0xff]
      %v247 = vld [vmem:[%s220 + $0x90] sm:$0xff]
      %v248 = vpack.c.bf16 %v230, %v229
      %v249 = vpack.c.bf16 %v232, %v231
      %v250 = vpack.c.bf16 %v234, %v233
      %v251 = vpack.c.bf16 %v236, %v235
      %v252 = vpack.c.bf16 %v238, %v237
      %v253 = vpack.c.bf16 %v240, %v239
      %v254 = vpack.c.bf16 %v242, %v241
      %v255 = vpack.c.bf16 %v244, %v243
      %v256 = vpack.c.bf16 %v246, %v245
      %v257 = vpack.c.bf16 %v247, %v247
      %v258 = vld [vmem:[%s1] sm:$0xf]
      %v259 = vld [vmem:[%s1 + $0x4] sm:$0xf]
      %v260 = vld [vmem:[%s2] sm:$0x1]
      %v262 = vlaneseq
      %v263 = vshrl.u32 %v262, 7
      %v264 = vsub.s32 0, %v263
      %v265 = vrot.slane %v260, %v264
      %v269 = vunpack.c.l.b16 %v258
      %v270 = vunpack.c.l.b16 %v259
      %v271 = vpack.c.b16 %v270, %v269
      %vm273 = vcmask 130048
      %v275 = vsel %vm273, %v248, 0
      %v278 = vsel %vm273, %v249, 0
      %v281 = vsel %vm273, %v250, 0
      %v284 = vsel %vm273, %v251, 0
      %v287 = vsel %vm273, %v252, 0
      %v290 = vsel %vm273, %v253, 0
      %v293 = vsel %vm273, %v254, 0
      %v296 = vsel %vm273, %v255, 0
      %v299 = vsel %vm273, %v256, 0
      %v302 = vsel %vm273, %v257, 0
      %304 = vmatprep.subr.bf16.mxu0 0
      %305 = vmatpush1.bf16.msra.mxu0 %v271
      %306 = vmatprep.subr.bf16.mxu0 0
      %307 = vmatpush1.bf16.msra.mxu0 0
      %308 = vmatprep.subr.bf16.mxu0 0
      %309 = vmatpush1.bf16.msra.mxu0 0
      %310 = vmatprep.subr.bf16.mxu0 0
      %311 = vmatpush1.bf16.msra.mxu0 0
      %312 = vmatprep.subr.bf16.mxu0 0
      %313 = vmatpush1.bf16.msra.mxu0 0
      %314 = vmatprep.subr.bf16.mxu0 0
      %315 = vmatpush1.bf16.msra.mxu0 0
      %316 = vmatprep.subr.bf16.mxu0 0
      %317 = vmatpush1.bf16.msra.mxu0 0
      %318 = vmatprep.subr.bf16.mxu0 0
      %319 = vmatpush1.bf16.msra.mxu0 0
      %320 = vmatprep.subr.bf16.mxu0 0
      %321 = vmatpush1.bf16.msra.mxu0 0
      %322 = vmatprep.subr.bf16.mxu0 0
      %323 = vmatpush1.bf16.msra.mxu0 0
      %324 = vmatprep.subr.bf16.mxu0 0
      %325 = vmatpush1.bf16.msra.mxu0 0
      %326 = vmatprep.subr.bf16.mxu0 0
      %327 = vmatpush1.bf16.msra.mxu0 0
      %328 = vmatprep.subr.bf16.mxu0 0
      %329 = vmatpush1.bf16.msra.mxu0 0
      %330 = vmatprep.subr.bf16.mxu0 0
      %331 = vmatpush1.bf16.msra.mxu0 0
      %332 = vmatprep.subr.bf16.mxu0 0
      %333 = vmatpush1.bf16.msra.mxu0 0
      %334 = vmatprep.subr.bf16.mxu0 0
      %335 = vmatpush1.bf16.msra.mxu0 0
      %336 = vmatprep.mubr.bf16.mxu0 0
      %337 = vmatmul.mubr.bf16.gmra.mrb[0].mxu0 %v275
      %v338 = vpop.f32.mrb[0].mxu0
      %v339 = vadd.f32 %v265, %v338
      %v340 = vpop.f32.mrb[0].mxu0
      %v341 = vpop.f32.mrb[0].mxu0
      %v342 = vadd.f32 %v265, %v341
      %v343 = vpop.f32.mrb[0].mxu0
      %344 = vmatprep.mubr.bf16.mxu0 0
      %345 = vmatmul.mubr.bf16.gmra.mrb[0].mxu0 %v278
      %v346 = vpop.f32.mrb[0].mxu0
      %v347 = vadd.f32 %v265, %v346
      %v348 = vpop.f32.mrb[0].mxu0
      %v349 = vpop.f32.mrb[0].mxu0
      %v350 = vadd.f32 %v265, %v349
      %v351 = vpop.f32.mrb[0].mxu0
      %352 = vmatprep.mubr.bf16.mxu0 0
      %353 = vmatmul.mubr.bf16.gmra.mrb[0].mxu0 %v281
      %v354 = vpop.f32.mrb[0].mxu0
      %v355 = vadd.f32 %v265, %v354
      %v356 = vpop.f32.mrb[0].mxu0
      %v357 = vpop.f32.mrb[0].mxu0
      %v358 = vadd.f32 %v265, %v357
      %v359 = vpop.f32.mrb[0].mxu0
      %360 = vmatprep.mubr.bf16.mxu0 0
      %361 = vmatmul.mubr.bf16.gmra.mrb[0].mxu0 %v284
      %v362 = vpop.f32.mrb[0].mxu0
      %v363 = vadd.f32 %v265, %v362
      %v364 = vpop.f32.mrb[0].mxu0
      %v365 = vpop.f32.mrb[0].mxu0
      %v366 = vadd.f32 %v265, %v365
      %v367 = vpop.f32.mrb[0].mxu0
      %368 = vmatprep.mubr.bf16.mxu0 0
      %369 = vmatmul.mubr.bf16.gmra.mrb[0].mxu0 %v287
      %v370 = vpop.f32.mrb[0].mxu0
      %v371 = vadd.f32 %v265, %v370
      %v372 = vpop.f32.mrb[0].mxu0
      %v373 = vpop.f32.mrb[0].mxu0
      %v374 = vadd.f32 %v265, %v373
      %v375 = vpop.f32.mrb[0].mxu0
      %376 = vmatprep.mubr.bf16.mxu0 0
      %377 = vmatmul.mubr.bf16.gmra.mrb[0].mxu0 %v290
      %v378 = vpop.f32.mrb[0].mxu0
      %v379 = vadd.f32 %v265, %v378
      %v380 = vpop.f32.mrb[0].mxu0
      %v381 = vpop.f32.mrb[0].mxu0
      %v382 = vadd.f32 %v265, %v381
      %v383 = vpop.f32.mrb[0].mxu0
      %384 = vmatprep.mubr.bf16.mxu0 0
      %385 = vmatmul.mubr.bf16.gmra.mrb[0].mxu0 %v293
      %v386 = vpop.f32.mrb[0].mxu0
      %v387 = vadd.f32 %v265, %v386
      %v388 = vpop.f32.mrb[0].mxu0
      %v389 = vpop.f32.mrb[0].mxu0
      %v390 = vadd.f32 %v265, %v389
      %v391 = vpop.f32.mrb[0].mxu0
      %392 = vmatprep.mubr.bf16.mxu0 0
      %393 = vmatmul.mubr.bf16.gmra.mrb[0].mxu0 %v296
      %v394 = vpop.f32.mrb[0].mxu0
      %v395 = vadd.f32 %v265, %v394
      %v396 = vpop.f32.mrb[0].mxu0
      %v397 = vpop.f32.mrb[0].mxu0
      %v398 = vadd.f32 %v265, %v397
      %v399 = vpop.f32.mrb[0].mxu0
      %400 = vmatprep.mubr.bf16.mxu0 0
      %401 = vmatmul.mubr.bf16.gmra.mrb[0].mxu0 %v299
      %v402 = vpop.f32.mrb[0].mxu0
      %v403 = vadd.f32 %v265, %v402
      %v404 = vpop.f32.mrb[0].mxu0
      %v405 = vpop.f32.mrb[0].mxu0
      %v406 = vadd.f32 %v265, %v405
      %v407 = vpop.f32.mrb[0].mxu0
      %408 = vmatprep.mubr.bf16.mxu0 0
      %409 = vmatmul.mubr.bf16.gmra.mrb[0].mxu0 %v302
      %v410 = vpop.f32.mrb[0].mxu0
      %v411 = vadd.f32 %v265, %v410
      %v412 = vpop.f32.mrb[0].mxu0
      %v413 = vpop.f32.mrb[0].mxu0
      %v414 = vpop.f32.mrb[0].mxu0
      %415 = vdwg.mxu0
      %v416 = vmax.f32 %v339, 0.0
      %v417 = vmax.f32 %v342, 0.0
      %v418 = vmax.f32 %v347, 0.0
      %v419 = vmax.f32 %v350, 0.0
      %v420 = vmax.f32 %v355, 0.0
      %v421 = vmax.f32 %v358, 0.0
      %v422 = vmax.f32 %v363, 0.0
      %v423 = vmax.f32 %v366, 0.0
      %v424 = vmax.f32 %v371, 0.0
      %v425 = vmax.f32 %v374, 0.0
      %v426 = vmax.f32 %v379, 0.0
      %v427 = vmax.f32 %v382, 0.0
      %v428 = vmax.f32 %v387, 0.0
      %v429 = vmax.f32 %v390, 0.0
      %v430 = vmax.f32 %v395, 0.0
      %v431 = vmax.f32 %v398, 0.0
      %v432 = vmax.f32 %v403, 0.0
      %v433 = vmax.f32 %v406, 0.0
      %v434 = vmax.f32 %v411, 0.0
      %v435 = vpack.c.bf16 %v417, %v416
      %v436 = vpack.c.bf16 %v419, %v418
      %v437 = vpack.c.bf16 %v421, %v420
      %v438 = vpack.c.bf16 %v423, %v422
      %v439 = vpack.c.bf16 %v425, %v424
      %v440 = vpack.c.bf16 %v427, %v426
      %v441 = vpack.c.bf16 %v429, %v428
      %v442 = vpack.c.bf16 %v431, %v430
      %v443 = vpack.c.bf16 %v433, %v432
      %v444 = vpack.c.bf16 %v434, %v434
      %v445 = vld [vmem:[%s3] sm:$0xf]
      %v446 = vld [vmem:[%s3 + $0x4] sm:$0xf]
      %v447 = vld [vmem:[%s3 + $0x8] sm:$0xf]
      %v448 = vld [vmem:[%s3 + $0xc] sm:$0xf]
      %v449 = vld [vmem:[%s4] sm:$0x1]
      %v451 = vlaneseq
      %v452 = vshrl.u32 %v451, 7
      %v453 = vsub.s32 0, %v452
      %v454 = vrot.slane %v449, %v453
      %v460 = vunpack.c.l.b16 %v445
      %v461 = vunpack.c.l.b16 %v446
      %v462 = vunpack.c.l.b16 %v447
      %v463 = vunpack.c.l.b16 %v448
      %v464 = vpack.c.b16 %v461, %v460
      %v465 = vpack.c.b16 %v463, %v462
      %vm468 = vcmask 261120
      %v470 = vsel %vm468, %v435, 0
      %v473 = vsel %vm468, %v436, 0
      %v476 = vsel %vm468, %v437, 0
      %v479 = vsel %vm468, %v438, 0
      %v482 = vsel %vm468, %v439, 0
      %v485 = vsel %vm468, %v440, 0
      %v488 = vsel %vm468, %v441, 0
      %v491 = vsel %vm468, %v442, 0
      %v494 = vsel %vm468, %v443, 0
      %v497 = vsel %vm468, %v444, 0
      %499 = vmatprep.subr.bf16.mxu0 0
      %500 = vmatpush1.bf16.msra.mxu0 %v464
      %501 = vmatprep.subr.bf16.mxu0 0
      %502 = vmatpush1.bf16.msra.mxu0 %v465
      %503 = vmatprep.subr.bf16.mxu0 0
      %504 = vmatpush1.bf16.msra.mxu0 0
      %505 = vmatprep.subr.bf16.mxu0 0
      %506 = vmatpush1.bf16.msra.mxu0 0
      %507 = vmatprep.subr.bf16.mxu0 0
      %508 = vmatpush1.bf16.msra.mxu0 0
      %509 = vmatprep.subr.bf16.mxu0 0
      %510 = vmatpush1.bf16.msra.mxu0 0
      %511 = vmatprep.subr.bf16.mxu0 0
      %512 = vmatpush1.bf16.msra.mxu0 0
      %513 = vmatprep.subr.bf16.mxu0 0
      %514 = vmatpush1.bf16.msra.mxu0 0
      %515 = vmatprep.subr.bf16.mxu0 0
      %516 = vmatpush1.bf16.msra.mxu0 0
      %517 = vmatprep.subr.bf16.mxu0 0
      %518 = vmatpush1.bf16.msra.mxu0 0
      %519 = vmatprep.subr.bf16.mxu0 0
      %520 = vmatpush1.bf16.msra.mxu0 0
      %521 = vmatprep.subr.bf16.mxu0 0
      %522 = vmatpush1.bf16.msra.mxu0 0
      %523 = vmatprep.subr.bf16.mxu0 0
      %524 = vmatpush1.bf16.msra.mxu0 0
      %525 = vmatprep.subr.bf16.mxu0 0
      %526 = vmatpush1.bf16.msra.mxu0 0
      %527 = vmatprep.subr.bf16.mxu0 0
      %528 = vmatpush1.bf16.msra.mxu0 0
      %529 = vmatprep.subr.bf16.mxu0 0
      %530 = vmatpush1.bf16.msra.mxu0 0
      %531 = vmatprep.mubr.bf16.mxu0 0
      %532 = vmatmul.mubr.bf16.gmra.mrb[0].mxu0 %v470
      %v533 = vpop.f32.mrb[0].mxu0
      %v534 = vadd.f32 %v454, %v533
      %v535 = vpop.f32.mrb[0].mxu0
      %v536 = vpop.f32.mrb[0].mxu0
      %v537 = vadd.f32 %v454, %v536
      %v538 = vpop.f32.mrb[0].mxu0
      %539 = vmatprep.mubr.bf16.mxu0 0
      %540 = vmatmul.mubr.bf16.gmra.mrb[0].mxu0 %v473
      %v541 = vpop.f32.mrb[0].mxu0
      %v542 = vadd.f32 %v454, %v541
      %v543 = vpop.f32.mrb[0].mxu0
      %v544 = vpop.f32.mrb[0].mxu0
      %v545 = vadd.f32 %v454, %v544
      %v546 = vpop.f32.mrb[0].mxu0
      %547 = vmatprep.mubr.bf16.mxu0 0
      %548 = vmatmul.mubr.bf16.gmra.mrb[0].mxu0 %v476
      %v549 = vpop.f32.mrb[0].mxu0
      %v550 = vadd.f32 %v454, %v549
      %v551 = vpop.f32.mrb[0].mxu0
      %v552 = vpop.f32.mrb[0].mxu0
      %v553 = vadd.f32 %v454, %v552
      %v554 = vpop.f32.mrb[0].mxu0
      %555 = vmatprep.mubr.bf16.mxu0 0
      %556 = vmatmul.mubr.bf16.gmra.mrb[0].mxu0 %v479
      %v557 = vpop.f32.mrb[0].mxu0
      %v558 = vadd.f32 %v454, %v557
      %v559 = vpop.f32.mrb[0].mxu0
      %v560 = vpop.f32.mrb[0].mxu0
      %v561 = vadd.f32 %v454, %v560
      %v562 = vpop.f32.mrb[0].mxu0
      %563 = vmatprep.mubr.bf16.mxu0 0
      %564 = vmatmul.mubr.bf16.gmra.mrb[0].mxu0 %v482
      %v565 = vpop.f32.mrb[0].mxu0
      %v566 = vadd.f32 %v454, %v565
      %v567 = vpop.f32.mrb[0].mxu0
      %v568 = vpop.f32.mrb[0].mxu0
      %v569 = vadd.f32 %v454, %v568
      %v570 = vpop.f32.mrb[0].mxu0
      %571 = vmatprep.mubr.bf16.mxu0 0
      %572 = vmatmul.mubr.bf16.gmra.mrb[0].mxu0 %v485
      %v573 = vpop.f32.mrb[0].mxu0
      %v574 = vadd.f32 %v454, %v573
      %v575 = vpop.f32.mrb[0].mxu0
      %v576 = vpop.f32.mrb[0].mxu0
      %v577 = vadd.f32 %v454, %v576
      %v578 = vpop.f32.mrb[0].mxu0
      %579 = vmatprep.mubr.bf16.mxu0 0
      %580 = vmatmul.mubr.bf16.gmra.mrb[0].mxu0 %v488
      %v581 = vpop.f32.mrb[0].mxu0
      %v582 = vadd.f32 %v454, %v581
      %v583 = vpop.f32.mrb[0].mxu0
      %v584 = vpop.f32.mrb[0].mxu0
      %v585 = vadd.f32 %v454, %v584
      %v586 = vpop.f32.mrb[0].mxu0
      %587 = vmatprep.mubr.bf16.mxu0 0
      %588 = vmatmul.mubr.bf16.gmra.mrb[0].mxu0 %v491
      %v589 = vpop.f32.mrb[0].mxu0
      %v590 = vadd.f32 %v454, %v589
      %v591 = vpop.f32.mrb[0].mxu0
      %v592 = vpop.f32.mrb[0].mxu0
      %v593 = vadd.f32 %v454, %v592
      %v594 = vpop.f32.mrb[0].mxu0
      %595 = vmatprep.mubr.bf16.mxu0 0
      %596 = vmatmul.mubr.bf16.gmra.mrb[0].mxu0 %v494
      %v597 = vpop.f32.mrb[0].mxu0
      %v598 = vadd.f32 %v454, %v597
      %v599 = vpop.f32.mrb[0].mxu0
      %v600 = vpop.f32.mrb[0].mxu0
      %v601 = vadd.f32 %v454, %v600
      %v602 = vpop.f32.mrb[0].mxu0
      %603 = vmatprep.mubr.bf16.mxu0 0
      %604 = vmatmul.mubr.bf16.gmra.mrb[0].mxu0 %v497
      %v605 = vpop.f32.mrb[0].mxu0
      %v606 = vadd.f32 %v454, %v605
      %v607 = vpop.f32.mrb[0].mxu0
      %v608 = vpop.f32.mrb[0].mxu0
      %v609 = vpop.f32.mrb[0].mxu0
      %610 = vdwg.mxu0
      %vm611 = vcmask 64512
      %612 = vst.msk [vmem:[%s226] sm:$0xff] %vm611, %v534
      %613 = vst.msk [vmem:[%s226 + $0x8] sm:$0xff] %vm611, %v537
      %614 = vst.msk [vmem:[%s226 + $0x10] sm:$0xff] %vm611, %v542
      %615 = vst.msk [vmem:[%s226 + $0x18] sm:$0xff] %vm611, %v545
      %616 = vst.msk [vmem:[%s226 + $0x20] sm:$0xff] %vm611, %v550
      %617 = vst.msk [vmem:[%s226 + $0x28] sm:$0xff] %vm611, %v553
      %618 = vst.msk [vmem:[%s226 + $0x30] sm:$0xff] %vm611, %v558
      %619 = vst.msk [vmem:[%s226 + $0x38] sm:$0xff] %vm611, %v561
      %620 = vst.msk [vmem:[%s226 + $0x40] sm:$0xff] %vm611, %v566
      %621 = vst.msk [vmem:[%s226 + $0x48] sm:$0xff] %vm611, %v569
      %622 = vst.msk [vmem:[%s226 + $0x50] sm:$0xff] %vm611, %v574
      %623 = vst.msk [vmem:[%s226 + $0x58] sm:$0xff] %vm611, %v577
      %624 = vst.msk [vmem:[%s226 + $0x60] sm:$0xff] %vm611, %v582
      %625 = vst.msk [vmem:[%s226 + $0x68] sm:$0xff] %vm611, %v585
      %626 = vst.msk [vmem:[%s226 + $0x70] sm:$0xff] %vm611, %v590
      %627 = vst.msk [vmem:[%s226 + $0x78] sm:$0xff] %vm611, %v593
      %628 = vst.msk [vmem:[%s226 + $0x80] sm:$0xff] %vm611, %v598
      %629 = vst.msk [vmem:[%s226 + $0x88] sm:$0xff] %vm611, %v601
      %630 = vst.msk [vmem:[%s226 + $0x90] sm:$0xff] %vm611, %v606
      %s631 = smul.u32 19, %s16
      %p632 = scmp.lt.s32.totalorder %s631, 37
      %s633 = scalar_select %p632, %s631, 37
      %s634 = smul.addr %s633, 8
      %s635 = scalar_lea.vmem %s5, %s634
      // Predicated region
      $region41: #{qnet_forward.1} parent=39 // pred_check
        %p636 = pneg %p144
      $region42: #{qnet_forward.1} parent=39 // pred_check_branch
        %638 = sbr.rel (%p636) target = $region44
      $region43: #{qnet_forward.1} parent=39 // pred_region
        %s639 = smul.u32 19, %s16
      $region44: #{qnet_forward.1} parent=39 // pred_fallthru
        _
    $region40: #{qnet_forward.1} parent=5 // pred_fallthru
      _
    %p640 = scmp.le.s32.totalorder 2, %s11
    // Predicated region
    $region45: #{qnet_forward.1} parent=5 // pred_check
      %p641 = pneg %p640
    $region46: #{qnet_forward.1} parent=5 // pred_check_branch
      %643 = sbr.rel (%p641) target = $region48
    $region47: #{qnet_forward.1} parent=5 // pred_region
      %s644 = ssub.s32 %s11, 2
      // Predicated region
      $region49: #{qnet_forward.1} parent=47 // pred_check
        %p645 = pneg %p150
      $region50: #{qnet_forward.1} parent=47 // pred_check_branch
        %647 = sbr.rel (%p645) target = $region52
      $region51: #{qnet_forward.1} parent=47 // pred_region
        %s648 = smul.u32 19, %s17
        %p649 = scmp.lt.s32.totalorder %s648, 37
        %s650 = scalar_select %p649, %s648, 37
        %s651 = smul.addr %s650, 8
        %s652 = scalar_lea.vmem %s5, %s651
      $region52: #{qnet_forward.1} parent=47 // pred_fallthru
        _
    $region48: #{qnet_forward.1} parent=5 // pred_fallthru
      _
  $region6: #{qnet_forward.1} parent=0 // loop_footer
    %s15 = sadd.s32 1, %s11
  $region7: #{qnet_forward.1} parent=0 // loop_footer_branch
    %10 = sbr.rel target = $region3
  $region8: #{qnet_forward.1} parent=0 // loop_exit
    _

</llo_original>
